<compile_context>
chip_gen: v6e
topology: v6e:2x2x1
jax: 0.10.0
libtpu: 0.0.40
codegen_flags: <defaults>
</compile_context>

<pallas_src>
import jax
import jax.numpy as jnp
from jax.experimental import pallas as pl
from jax.experimental.pallas import tpu as pltpu


def _linreg_kernel(x_ref, w_ref, b_ref, o_ref):
    # MXU matmul of one (TILE_N, D) batch tile against the (D, 1) weight
    # column, f32 accumulation, plus scalar bias broadcast from SMEM.
    acc = jnp.dot(x_ref[...], w_ref[...], preferred_element_type=jnp.float32)
    o_ref[...] = acc + b_ref[0, 0]


def _pick_tile_n(n, d, vmem_budget_bytes=12 * 1024 * 1024, max_tile=2048):
    """Largest 8-aligned batch tile whose double-buffered X block fits budget.

    Budget is kept well under the smallest scoped-VMEM default across
    generations (v5e 16 MiB before the raise, v6e/v7x 32 MiB), leaving room
    for the double-buffered output block, W, and compiler scratch.
    """
    max_rows = max(8, vmem_budget_bytes // (2 * d * 4))  # 2x = double buffer
    tile = min(n, max_rows, max_tile)
    tile = max(8, (tile // 8) * 8)  # f32 sublane alignment
    return tile


def linear_regression_forward(x, w, b):
    """x: (N, D) f32, w: (D, 1) f32, b: (1,) f32 -> (N, 1) f32."""
    x = x.astype(jnp.float32)
    w = w.astype(jnp.float32)
    b = b.astype(jnp.float32)

    N, D = x.shape
    tile_n = _pick_tile_n(N, D)
    num_tiles = pl.cdiv(N, tile_n)
    n_pad = num_tiles * tile_n

    # Ragged last tile: zero-pad the batch (padding rows produce `b`, sliced
    # off below), keeping every (tile_n, D) block fully in-bounds.
    if n_pad != N:
        x = jnp.pad(x, ((0, n_pad - N), (0, 0)))

    out = pl.pallas_call(
        _linreg_kernel,
        out_shape=jax.ShapeDtypeStruct((n_pad, 1), jnp.float32),
        grid_spec=pltpu.PrefetchScalarGridSpec(
            num_scalar_prefetch=0,
            grid=(num_tiles,),
            in_specs=[
                # X: stream one batch tile per grid step (double-buffered).
                pl.BlockSpec((tile_n, D), lambda i: (i, 0)),
                # W: full (D, 1) column, replicated across grid steps.
                pl.BlockSpec((D, 1), lambda i: (0, 0)),
                # Bias: scalar in SMEM, replicated.
                pl.BlockSpec((1, 1), lambda i: (0, 0), memory_space=pltpu.SMEM),
            ],
            out_specs=pl.BlockSpec((tile_n, 1), lambda i: (i, 0)),
        ),
        compiler_params=pltpu.CompilerParams(
            dimension_semantics=("parallel",),
            vmem_limit_bytes=32 * 1024 * 1024,
        ),
        cost_estimate=pl.CostEstimate(
            flops=2 * N * D,
            transcendentals=0,
            bytes_accessed=4 * (N * D + D + N + 1),
        ),
    )(x, w, b.reshape(1, 1))

    return out[:N] if n_pad != N else out


class LinearRegression:
    """JAX/Pallas port of the PyTorch LinearRegression module (forward only)."""

    def __init__(self, num_inputs, learning_rate, sigma=0.01, key=None):
        self.num_inputs = num_inputs
        self.learning_rate = learning_rate
        self.sigma = sigma
        if key is None:
            key = jax.random.PRNGKey(0)
        # torch.normal(0, sigma, (num_inputs, 1)) equivalent (deterministic).
        self.weights = sigma * jax.random.normal(
            key, (num_inputs, 1), dtype=jnp.float32
        )
        # torch.zeros(1) equivalent.
        self.biases = jnp.zeros((1,), dtype=jnp.float32)

    def forward(self, X):
        return linear_regression_forward(X, self.weights, self.biases)

    def loss(self, y_hat, y):
        # Plain-JAX glue; not the kernel hot path.
        l = (y_hat - y) ** 2 / 2
        return l.mean()

    # TODO(synk): StochasticGradientDescent.step/zero_grad are host-side
    # training-loop utilities (in-place grad updates); no Pallas kernel needed.


if __name__ == "__main__":
    key = jax.random.PRNGKey(0)
    k_w, k_x, k_x2 = jax.random.split(key, 3)

    # Small demo shapes consistent with the module.
    batch = 8
    num_inputs = 32

    model = LinearRegression(num_inputs=num_inputs, learning_rate=0.03, key=k_w)
    X = jax.random.normal(k_x, (batch, num_inputs), dtype=jnp.float32)

    y_hat = model.forward(X)
    y_hat = jax.block_until_ready(y_hat)

    ref = X @ model.weights + model.biases
    assert y_hat.shape == (batch, 1)
    assert jnp.allclose(y_hat, ref, atol=1e-5, rtol=1e-5)

    # Second check: ragged, multi-tile batch to exercise the grid + padding path.
    batch2 = 2050  # > tile cap (2048) and not a multiple of it
    X2 = jax.random.normal(k_x2, (batch2, num_inputs), dtype=jnp.float32)
    y_hat2 = jax.block_until_ready(model.forward(X2))
    ref2 = X2 @ model.weights + model.biases
    assert y_hat2.shape == (batch2, 1)
    assert jnp.allclose(y_hat2, ref2, atol=1e-5, rtol=1e-5)

    print("KERNEL_OK")
</pallas_src>

<mosaic_0001>
module attributes {stable_mosaic.version = 11 : i64} {
  func.func @_linreg_kernel(%arg0: i32, %arg1: memref<8x32xf32, #tpu.memory_space<vmem>>, %arg2: memref<32x1xf32, #tpu.memory_space<vmem>>, %arg3: memref<1x1xf32, #tpu.memory_space<smem>>, %arg4: memref<8x1xf32, #tpu.memory_space<vmem>>) attributes {dimension_semantics = [#tpu.dimension_semantics<parallel>], iteration_bounds = array<i64: 1>, scalar_prefetch = 0 : i64, scratch_operands = 0 : i64, tpu.core_type = #tpu.core_type<tc>, window_params = [{transform_indices = @transform_0, window_bounds = array<i64: 8, 32>}, {pipeline_mode = #tpu.pipeline_mode<synchronous>, transform_indices = @transform_1, window_bounds = array<i64: 32, 1>}, {transform_indices = @transform_2, window_bounds = array<i64: 1, 1>}, {transform_indices = @transform_3, window_bounds = array<i64: 8, 1>}]} {
    %c0 = arith.constant 0 : index
    %c0_0 = arith.constant 0 : index
    %0 = vector.load %arg1[%c0, %c0_0] : memref<8x32xf32, #tpu.memory_space<vmem>>, vector<8x32xf32>
    %c0_1 = arith.constant 0 : index
    %c0_2 = arith.constant 0 : index
    %1 = vector.load %arg2[%c0_1, %c0_2] : memref<32x1xf32, #tpu.memory_space<vmem>>, vector<32x1xf32>
    %cst = arith.constant dense<0.000000e+00> : vector<8x1xf32>
    %2 = tpu.matmul %0, %1, %cst {dimension_numbers = #tpu.dot_dimension_numbers<[1], [0], [0], [1], [0, 0, 1, 1], [], []>} : vector<8x32xf32>, vector<32x1xf32>, vector<8x1xf32> -> vector<8x1xf32>
    %c0_3 = arith.constant 0 : index
    %c0_4 = arith.constant 0 : index
    %3 = memref.load %arg3[%c0_3, %c0_4] : memref<1x1xf32, #tpu.memory_space<smem>>
    %4 = vector.broadcast %3 : f32 to vector<8x1xf32>
    %5 = arith.addf %2, %4 : vector<8x1xf32>
    %c0_5 = arith.constant 0 : index
    %c0_6 = arith.constant 0 : index
    %6 = vector.load %arg4[%c0_5, %c0_6] : memref<8x1xf32, #tpu.memory_space<vmem>>, vector<8x1xf32>
    tpu.vector_store %arg4[%c0_5, %c0_6], %5 {strides = array<i32>} : memref<8x1xf32, #tpu.memory_space<vmem>>, vector<8x1xf32>,
    return
  }
  func.func @transform_0(%arg0: i32) -> (i32, i32) {
    %c0_i32 = arith.constant 0 : i32
    %c0_i32_0 = arith.constant 0 : i32
    return %arg0, %c0_i32 : i32, i32
  }
  func.func @transform_1(%arg0: i32) -> (i32, i32) {
    %c0_i32 = arith.constant 0 : i32
    %c0_i32_0 = arith.constant 0 : i32
    %c0_i32_1 = arith.constant 0 : i32
    return %c0_i32, %c0_i32_0 : i32, i32
  }
  func.func @transform_2(%arg0: i32) -> (i32, i32) {
    %c0_i32 = arith.constant 0 : i32
    %c0_i32_0 = arith.constant 0 : i32
    %c0_i32_1 = arith.constant 0 : i32
    return %c0_i32, %c0_i32_0 : i32, i32
  }
  func.func @transform_3(%arg0: i32) -> (i32, i32) {
    %c0_i32 = arith.constant 0 : i32
    %c0_i32_0 = arith.constant 0 : i32
    return %arg0, %c0_i32 : i32, i32
  }
}

</mosaic_0001>

<llo_original>
// kernel: tpu_custom_call.1
$region0: #{tpu_custom_call.1}
  #allocation0 [shape = 'u32[]', space=smem, size = 0x4, offset = 0x4, fixed_abs, tag = 'smem constant byte address 0x4 - core index']
  #allocation1 [shape = 'u32[144,128]{1,0:T(1,128)}', space=vmem, size = 0x12000, scoped, tag = 'internal scratch']
  #allocation2 [shape = 'f32[1,1]{1,0:T(1,128)S(6)}', space=smem, size = 0x200, scoped, tag = 'scoped memory for tpu_custom_call.1']
  %s0 = inlined_call_operand.vmem [shape: f32[8,32], index: 0, kind: input, shape index: {}]
  %s1 = inlined_call_operand.vmem [shape: f32[32,1], index: 1, kind: input, shape index: {}]
  %s2 = inlined_call_operand.<no memory space> [shape: f32[1,1], index: 2, kind: input, shape index: {}]
  %s3 = inlined_call_operand.vmem [shape: f32[8,1], index: 3, kind: output, shape index: {}]
  %s4 = sld [smem:[#allocation0]]
  $region22: #{tpu_custom_call.1} parent=0
    _
  %s6 = ssub.s32 1, %s4
  %s7 = scalar_select 0, %s6, %s4
  %8 = sst [smem:[#allocation2]] %s2
  // Predicated region
  $region2: #{tpu_custom_call.1} parent=0 // pred_check
    _
  $region3: #{tpu_custom_call.1} parent=0 // pred_check_branch
    %10 = sbr.rel (0) target = $region5
  $region4: #{tpu_custom_call.1} parent=0 // pred_region
    _
  $region5: #{tpu_custom_call.1} parent=0 // pred_fallthru
    _
  // Predicated region
  $region6: #{tpu_custom_call.1} parent=0 // pred_check
    _
  $region7: #{tpu_custom_call.1} parent=0 // pred_check_branch
    %12 = sbr.rel (0) target = $region9
  $region8: #{tpu_custom_call.1} parent=0 // pred_region
    _
  $region9: #{tpu_custom_call.1} parent=0 // pred_fallthru
    _
  // Predicated region
  $region10: #{tpu_custom_call.1} parent=0 // pred_check
    _
  $region11: #{tpu_custom_call.1} parent=0 // pred_check_branch
    %14 = sbr.rel (0) target = $region13
  $region12: #{tpu_custom_call.1} parent=0 // pred_region
    _
  $region13: #{tpu_custom_call.1} parent=0 // pred_fallthru
    _
  %v15 = vld [vmem:[%s0] sm:$0xff]
  %v16 = vld [vmem:[%s1] sm:$0xff]
  %v17 = vld [vmem:[%s1 + $0x8] sm:$0xff]
  %v18 = vld [vmem:[%s1 + $0x10] sm:$0xff]
  %v19 = vld [vmem:[%s1 + $0x18] sm:$0xff]
  %s20 = sld [smem:[#allocation2]]
  %v21 = vstv %s20
  %vm22 = vcmask 261120
  %v24 = vsel %vm22, %v15, 0
  %26 = vmatprep.subr.mxu0 0.0
  %27 = vmatpush1.msra.mxu0 0.0
  %28 = vmatprep.subr.mxu0 0.0
  %29 = vmatpush1.msra.mxu0 0.0
  %30 = vmatprep.subr.mxu0 0.0
  %31 = vmatpush1.msra.mxu0 0.0
  %32 = vmatprep.subr.mxu0 0.0
  %33 = vmatpush1.msra.mxu0 0.0
  %34 = vmatprep.subr.mxu0 0.0
  %35 = vmatpush1.msra.mxu0 0.0
  %36 = vmatprep.subr.mxu0 0.0
  %37 = vmatpush1.msra.mxu0 0.0
  %38 = vmatprep.subr.mxu0 0.0
  %39 = vmatpush1.msra.mxu0 0.0
  %40 = vmatprep.subr.mxu0 0.0
  %41 = vmatpush1.msra.mxu0 0.0
  %42 = vmatprep.subr.mxu0 0.0
  %43 = vmatpush1.msra.mxu0 0.0
  %44 = vmatprep.subr.mxu0 0.0
  %45 = vmatpush1.msra.mxu0 0.0
  %46 = vmatprep.subr.mxu0 0.0
  %47 = vmatpush1.msra.mxu0 0.0
  %48 = vmatprep.subr.mxu0 0.0
  %49 = vmatpush1.msra.mxu0 0.0
  %50 = vmatprep.subr.mxu0 0.0
  %51 = vmatpush1.msra.mxu0 %v19
  %52 = vmatprep.subr.mxu0 0.0
  %53 = vmatpush1.msra.mxu0 %v18
  %54 = vmatprep.subr.mxu0 0.0
  %55 = vmatpush1.msra.mxu0 %v17
  %56 = vmatprep.subr.mxu0 0.0
  %57 = vmatpush1.msra.mxu0 %v16
  %58 = vmatprep.subr.mxu0 0.0
  %59 = vmatpush2.msra.mxu0 0.0
  %60 = vmatprep.subr.mxu0 0.0
  %61 = vmatpush2.msra.mxu0 0.0
  %62 = vmatprep.subr.mxu0 0.0
  %63 = vmatpush2.msra.mxu0 0.0
  %64 = vmatprep.subr.mxu0 0.0
  %65 = vmatpush2.msra.mxu0 0.0
  %66 = vmatprep.subr.mxu0 0.0
  %67 = vmatpush2.msra.mxu0 0.0
  %68 = vmatprep.subr.mxu0 0.0
  %69 = vmatpush2.msra.mxu0 0.0
  %70 = vmatprep.subr.mxu0 0.0
  %71 = vmatpush2.msra.mxu0 0.0
  %72 = vmatprep.subr.mxu0 0.0
  %73 = vmatpush2.msra.mxu0 0.0
  %74 = vmatprep.subr.mxu0 0.0
  %75 = vmatpush2.msra.mxu0 0.0
  %76 = vmatprep.subr.mxu0 0.0
  %77 = vmatpush2.msra.mxu0 0.0
  %78 = vmatprep.subr.mxu0 0.0
  %79 = vmatpush2.msra.mxu0 0.0
  %80 = vmatprep.subr.mxu0 0.0
  %81 = vmatpush2.msra.mxu0 0.0
  %82 = vmatprep.subr.mxu0 0.0
  %83 = vmatpush2.msra.mxu0 0.0
  %84 = vmatprep.subr.mxu0 0.0
  %85 = vmatpush2.msra.mxu0 0.0
  %86 = vmatprep.subr.mxu0 0.0
  %87 = vmatpush2.msra.mxu0 0.0
  %88 = vmatprep.subr.mxu0 0.0
  %89 = vmatpush2.msra.mxu0 0.0
  %90 = vmatprep.mubr.f32.mxu0 0.0
  %91 = vmatmul.mubr.f32.gmra.mxu0 %v24
  %v92 = vpop.f32.mrf.mxu0
  %v93 = vadd.f32 %v21, %v92
  %v94 = vpop.f32.mrf.mxu0
  %95 = vdwg.mxu0
  %vm96 = vcmask 7168
  %97 = vst.msk [vmem:[%s3] sm:$0xff] %vm96, %v93
  // Predicated region
  $region14: #{tpu_custom_call.1} parent=0 // pred_check
    _
  $region15: #{tpu_custom_call.1} parent=0 // pred_check_branch
    %99 = sbr.rel (0) target = $region17
  $region16: #{tpu_custom_call.1} parent=0 // pred_region
    _
  $region17: #{tpu_custom_call.1} parent=0 // pred_fallthru
    _
  // Predicated region
  $region18: #{tpu_custom_call.1} parent=0 // pred_check
    _
  $region19: #{tpu_custom_call.1} parent=0 // pred_check_branch
    %101 = sbr.rel (0) target = $region21
  $region20: #{tpu_custom_call.1} parent=0 // pred_region
    _
  $region21: #{tpu_custom_call.1} parent=0 // pred_fallthru
    _

</llo_original>
